<compile_context>
chip_gen: v6e
topology: v6e:2x2x1
jax: 0.10.0
libtpu: 0.0.40
codegen_flags: <defaults>
</compile_context>

<pallas_src>
import functools

import jax
import jax.numpy as jnp
from jax import lax
from jax.experimental import pallas as pl
from jax.experimental.pallas import tpu as pltpu

BN_EPS = 1e-5
# Working set per grid step is ~1-2 MiB even at tile_p=16384 (double-buffered bf16
# colsT block + f32 y block); 16 MiB <= the scoped VMEM default on every generation
# (v5e 16 / v6e 32 / v7x 32 MiB), so an accidental blow-up fails loudly at compile.
VMEM_LIMIT_BYTES = 16 * 1024 * 1024
N_CHUNKS = 2  # outer "parallel" grid axis; lets v7x shard across its 2 TensorCores.


def _cdiv(a, b):
    return -(-a // b)


# ------------------------------ Pallas kernel ------------------------------ #
def _conv_stats_kernel(colsT_ref, wT_ref, y_ref, sum_ref, sumsq_ref):
    """Conv-as-matmul + per-channel sum / sum-of-squares accumulation.

    colsT_ref : (K, tile_p)     bf16 im2col patches, pixel axis on the 128 lanes
    wT_ref    : (Cout, K)       bf16 conv weights
    y_ref     : (Cout, tile_p)  f32 conv output tile (lane-dense)
    sum_ref / sumsq_ref : (1, Cout, 1) f32, revisited across the inner grid axis
    """
    y = jnp.dot(wT_ref[...], colsT_ref[...], preferred_element_type=jnp.float32)
    y_ref[...] = y

    @pl.when(pl.program_id(1) == 0)
    def _init():
        sum_ref[...] = jnp.zeros_like(sum_ref)
        sumsq_ref[...] = jnp.zeros_like(sumsq_ref)

    sum_ref[...] += jnp.sum(y, axis=1, keepdims=True)[None]
    sumsq_ref[...] += jnp.sum(y * y, axis=1, keepdims=True)[None]


# --------------------------------- Wrapper ---------------------------------- #
def _im2col_transposed_bf16(x_nhwc, ksize, pad, dilate, p_pad):
    """(N,H,W,C) bf16 -> (K, p_pad) bf16 transposed im2col patches.

    K = ksize*ksize*Cin (tap-major, ci fastest).  The pixel axis P = N*Ho*Wo lands
    on the 128-lane dimension and is zero-padded to p_pad per-tap, so the big patch
    matrix is materialized exactly once, already in bf16 and already padded.
    """
    n, h, w, c = x_nhwc.shape
    h_out = h + 2 * pad - dilate * (ksize - 1)
    w_out = w + 2 * pad - dilate * (ksize - 1)
    p_true = n * h_out * w_out
    xp = jnp.pad(x_nhwc, ((0, 0), (pad, pad), (pad, pad), (0, 0)))
    taps = []
    for kh in range(ksize):
        for kw in range(ksize):
            sl = xp[:, kh * dilate:kh * dilate + h_out,
                       kw * dilate:kw * dilate + w_out, :]        # (N,Ho,Wo,Cin)
            t = jnp.transpose(sl, (3, 0, 1, 2)).reshape(c, p_true)
            taps.append(jnp.pad(t, ((0, 0), (0, p_pad - p_true))))
    return jnp.concatenate(taps, axis=0)


@functools.partial(jax.jit, static_argnames=("ksize", "pad", "dilate", "tile_p"))
def cobare_forward(x_nchw, weight_oihw, bias, gamma, beta,
                   ksize=3, pad=1, dilate=1, tile_p=8192):
    """CoBaRe forward. x_nchw: (N, Cin, H, W) float32. Returns NCHW float32.

    `bias` is accepted for API parity but intentionally NOT applied: a per-channel
    constant added before training-mode BatchNorm is exactly cancelled by the
    batch-mean subtraction.  (Do NOT reuse this with eval-mode running stats.)
    On v7x, pass tile_p=16384 so per-step HBM traffic stays >= ~1 MiB.
    """
    del bias
    cout, cin, kh_, kw_ = weight_oihw.shape
    assert kh_ == ksize and kw_ == ksize
    assert tile_p % 128 == 0, "tile_p must be a multiple of 128 lanes"

    n, _, h, w = x_nchw.shape
    h_out = h + 2 * pad - dilate * (ksize - 1)
    w_out = w + 2 * pad - dilate * (ksize - 1)
    p_true = n * h_out * w_out
    k = cin * ksize * ksize

    # Clamp tile_p for small inputs so a tiny problem isn't padded to 2 huge tiles,
    # then pad the tile count up to an even number (always 2 megacore chunks).
    tile_p = min(tile_p, 128 * max(1, _cdiv(p_true, 256)))
    num_tiles = _cdiv(p_true, tile_p)
    if num_tiles % N_CHUNKS:
        num_tiles += 1               # extra all-zero tile: contributes 0 to stats
    tiles_per_chunk = num_tiles // N_CHUNKS
    p_pad = num_tiles * tile_p

    # bf16 MXU inputs (f32 accumulation in-kernel); cast *before* im2col so the big
    # patch matrix never exists in f32.
    x_nhwc = jnp.transpose(x_nchw.astype(jnp.bfloat16), (0, 2, 3, 1))
    colsT = _im2col_transposed_bf16(x_nhwc, ksize, pad, dilate, p_pad)
    wT = jnp.transpose(weight_oihw, (0, 2, 3, 1)).reshape(cout, k).astype(jnp.bfloat16)

    # ---- Pass 1 (Pallas): conv + per-channel sum / sumsq ------------------------ #
    y_T, sum_p, sumsq_p = pl.pallas_call(
        _conv_stats_kernel,
        out_shape=(
            jax.ShapeDtypeStruct((cout, p_pad), jnp.float32),
            jax.ShapeDtypeStruct((N_CHUNKS, cout, 1), jnp.float32),
            jax.ShapeDtypeStruct((N_CHUNKS, cout, 1), jnp.float32),
        ),
        grid=(N_CHUNKS, tiles_per_chunk),
        in_specs=[
            pl.BlockSpec((k, tile_p), lambda c, t: (0, c * tiles_per_chunk + t)),
            pl.BlockSpec((cout, k), lambda c, t: (0, 0)),
        ],
        out_specs=(
            pl.BlockSpec((cout, tile_p), lambda c, t: (0, c * tiles_per_chunk + t)),
            pl.BlockSpec((1, cout, 1), lambda c, t: (c, 0, 0)),
            pl.BlockSpec((1, cout, 1), lambda c, t: (c, 0, 0)),
        ),
        compiler_params=pltpu.CompilerParams(
            dimension_semantics=("parallel", "arbitrary"),
            vmem_limit_bytes=VMEM_LIMIT_BYTES),
    )(colsT, wT)

    # ---- Fold BN (batch stats, biased variance) into per-channel scale/shift ---- #
    # NOTE: E[y^2]-mean^2 in f32 can cancel when |mean| >> std; clamped at 0 below.
    m = jnp.float32(p_true)
    total = jnp.sum(sum_p, axis=0)[:, 0]        # (Cout,)
    total_sq = jnp.sum(sumsq_p, axis=0)[:, 0]   # (Cout,)
    mean = total / m
    var = jnp.maximum(total_sq / m - mean * mean, 0.0)
    scale = gamma.astype(jnp.float32) * lax.rsqrt(var + BN_EPS)
    shift = beta.astype(jnp.float32) - mean * scale

    # ---- Epilogue (fused XLA): y*scale + shift, ReLU, (Cout,P) -> NCHW ----------- #
    # Per perf review: a dedicated Pallas pass here only added an extra HBM
    # round-trip on top of the unavoidable layout change to NCHW.
    y = y_T[:, :p_true]
    out = jnp.maximum(y * scale[:, None] + shift[:, None], 0.0)
    out = out.reshape(cout, n, h_out, w_out)
    return jnp.transpose(out, (1, 0, 2, 3))


# ---------------------------- Pure-JAX reference ----------------------------- #
def cobare_reference(x_nchw, weight_oihw, bias, gamma, beta,
                     ksize=3, pad=1, dilate=1, matmul_dtype=jnp.float32):
    y = lax.conv_general_dilated(
        x_nchw.astype(matmul_dtype), weight_oihw.astype(matmul_dtype),
        window_strides=(1, 1), padding=((pad, pad), (pad, pad)),
        rhs_dilation=(dilate, dilate),
        dimension_numbers=("NCHW", "OIHW", "NCHW"),
        preferred_element_type=jnp.float32)
    y = y + bias[None, :, None, None]
    mean = jnp.mean(y, axis=(0, 2, 3), keepdims=True)
    var = jnp.mean((y - mean) ** 2, axis=(0, 2, 3), keepdims=True)
    y_bn = (y - mean) * lax.rsqrt(var + BN_EPS)
    y_bn = y_bn * gamma[None, :, None, None] + beta[None, :, None, None]
    return jnp.maximum(y_bn, 0.0)


# ----------------------------------- Main ------------------------------------ #
if __name__ == "__main__":
    # Module defaults: in_ch=3, out_ch=3, kernel_size=3, padding=1, dilate=1.
    in_ch, out_ch, ksize, pad, dilate = 3, 3, 3, 1, 1
    N, H, W = 2, 16, 16

    key = jax.random.PRNGKey(0)
    kx, kw_, kb = jax.random.split(key, 3)

    x = jax.random.normal(kx, (N, in_ch, H, W), dtype=jnp.float32)
    fan_in = in_ch * ksize * ksize
    weight = jax.random.normal(kw_, (out_ch, in_ch, ksize, ksize),
                               dtype=jnp.float32) * (1.0 / jnp.sqrt(fan_in))
    bias = jax.random.normal(kb, (out_ch,), dtype=jnp.float32) * 0.1
    gamma = jnp.ones((out_ch,), dtype=jnp.float32)   # nn.BatchNorm2d default weight
    beta = jnp.zeros((out_ch,), dtype=jnp.float32)   # nn.BatchNorm2d default bias

    # Reference whose conv also uses bf16 MXU inputs (matches the kernel's matmul
    # precision; the rest of the BN math is f32 in both) + exact-f32 reference.
    ref_bf16 = cobare_reference(x, weight, bias, gamma, beta,
                                ksize=ksize, pad=pad, dilate=dilate,
                                matmul_dtype=jnp.bfloat16)
    ref_f32 = cobare_reference(x, weight, bias, gamma, beta,
                               ksize=ksize, pad=pad, dilate=dilate,
                               matmul_dtype=jnp.float32)

    # (a) tile_p=128: P = 2*16*16 = 512 -> 4 tiles -> grid (2 chunks, 2 tiles/chunk);
    #     exercises the revisited sum/sumsq accumulation across the inner grid axis.
    # (b) default tile_p: exercises the auto-clamp path (2 tiles, 1 per chunk).
    for tp in (128, None):
        kwargs = dict(ksize=ksize, pad=pad, dilate=dilate)
        if tp is not None:
            kwargs["tile_p"] = tp
        out = jax.block_until_ready(
            cobare_forward(x, weight, bias, gamma, beta, **kwargs))
        assert out.shape == (N, out_ch, H, W), out.shape

        err_bf16 = float(jnp.max(jnp.abs(out - ref_bf16)))
        assert err_bf16 < 2e-3, (tp, err_bf16)
        err_f32 = float(jnp.max(jnp.abs(out - ref_f32)))
        assert err_f32 < 5e-2, (tp, err_f32)

    print("KERNEL_OK")
</pallas_src>

<mosaic_0001>
module attributes {stable_mosaic.version = 11 : i64} {
  func.func @_conv_stats_kernel(%arg0: i32, %arg1: i32, %arg2: memref<27x128xbf16, #tpu.memory_space<vmem>>, %arg3: memref<3x27xbf16, #tpu.memory_space<vmem>>, %arg4: memref<3x128xf32, #tpu.memory_space<vmem>>, %arg5: memref<1x3x1xf32, #tpu.memory_space<vmem>>, %arg6: memref<1x3x1xf32, #tpu.memory_space<vmem>>) attributes {dimension_semantics = [#tpu.dimension_semantics<parallel>, #tpu.dimension_semantics<arbitrary>], iteration_bounds = array<i64: 2, 2>, scalar_prefetch = 0 : i64, scratch_operands = 0 : i64, tpu.core_type = #tpu.core_type<tc>, window_params = [{transform_indices = @transform_0, window_bounds = array<i64: 27, 128>}, {pipeline_mode = #tpu.pipeline_mode<synchronous>, transform_indices = @transform_1, window_bounds = array<i64: 3, 27>}, {transform_indices = @transform_2, window_bounds = array<i64: 3, 128>}, {transform_indices = @transform_3, window_bounds = array<i64: 1, 3, 1>}, {transform_indices = @transform_4, window_bounds = array<i64: 1, 3, 1>}]} {
    %c0 = arith.constant 0 : index
    %c0_0 = arith.constant 0 : index
    %0 = vector.load %arg3[%c0, %c0_0] : memref<3x27xbf16, #tpu.memory_space<vmem>>, vector<3x27xbf16>
    %c0_1 = arith.constant 0 : index
    %c0_2 = arith.constant 0 : index
    %1 = vector.load %arg2[%c0_1, %c0_2] : memref<27x128xbf16, #tpu.memory_space<vmem>>, vector<27x128xbf16>
    %cst = arith.constant dense<0.000000e+00> : vector<3x128xf32>
    %2 = tpu.matmul %0, %1, %cst {dimension_numbers = #tpu.dot_dimension_numbers<[1], [0], [0], [1], [0, 0, 1, 1], [], []>} : vector<3x27xbf16>, vector<27x128xbf16>, vector<3x128xf32> -> vector<3x128xf32>
    %c0_3 = arith.constant 0 : index
    %c0_4 = arith.constant 0 : index
    %3 = vector.load %arg4[%c0_3, %c0_4] : memref<3x128xf32, #tpu.memory_space<vmem>>, vector<3x128xf32>
    tpu.vector_store %arg4[%c0_3, %c0_4], %2 {strides = array<i32>} : memref<3x128xf32, #tpu.memory_space<vmem>>, vector<3x128xf32>,
    %c0_i32 = arith.constant 0 : i32
    %4 = arith.cmpi eq, %arg1, %c0_i32 : i32
    %5 = arith.extui %4 : i1 to i32
    %c0_i32_5 = arith.constant 0 : i32
    %6 = arith.cmpi ne, %5, %c0_i32_5 : i32
    scf.if %6 {
      %cst_20 = arith.constant 0.000000e+00 : f32
      %20 = vector.broadcast %cst_20 : f32 to vector<1x3x1xf32>
      %c0_21 = arith.constant 0 : index
      %c0_22 = arith.constant 0 : index
      %c0_23 = arith.constant 0 : index
      %21 = vector.load %arg5[%c0_21, %c0_22, %c0_23] : memref<1x3x1xf32, #tpu.memory_space<vmem>>, vector<1x3x1xf32>
      tpu.vector_store %arg5[%c0_21, %c0_22, %c0_23], %20 {strides = array<i32>} : memref<1x3x1xf32, #tpu.memory_space<vmem>>, vector<1x3x1xf32>,
      %cst_24 = arith.constant 0.000000e+00 : f32
      %22 = vector.broadcast %cst_24 : f32 to vector<1x3x1xf32>
      %c0_25 = arith.constant 0 : index
      %c0_26 = arith.constant 0 : index
      %c0_27 = arith.constant 0 : index
      %23 = vector.load %arg6[%c0_25, %c0_26, %c0_27] : memref<1x3x1xf32, #tpu.memory_space<vmem>>, vector<1x3x1xf32>
      tpu.vector_store %arg6[%c0_25, %c0_26, %c0_27], %22 {strides = array<i32>} : memref<1x3x1xf32, #tpu.memory_space<vmem>>, vector<1x3x1xf32>,
    } else {
    }
    %c0_6 = arith.constant 0 : index
    %c0_7 = arith.constant 0 : index
    %c0_8 = arith.constant 0 : index
    %7 = vector.load %arg5[%c0_6, %c0_7, %c0_8] : memref<1x3x1xf32, #tpu.memory_space<vmem>>, vector<1x3x1xf32>
    %cst_9 = arith.constant dense<0.000000e+00> : vector<3xf32>
    %8 = vector.multi_reduction <add>, %2, %cst_9 [1] : vector<3x128xf32> to vector<3xf32>
    %9 = vector.shape_cast %8 : vector<3xf32> to vector<3x1xf32>
    %10 = vector.shape_cast %9 : vector<3x1xf32> to vector<1x3x1xf32>
    %11 = arith.addf %7, %10 : vector<1x3x1xf32>
    %c0_10 = arith.constant 0 : index
    %c0_11 = arith.constant 0 : index
    %c0_12 = arith.constant 0 : index
    %12 = vector.load %arg5[%c0_10, %c0_11, %c0_12] : memref<1x3x1xf32, #tpu.memory_space<vmem>>, vector<1x3x1xf32>
    tpu.vector_store %arg5[%c0_10, %c0_11, %c0_12], %11 {strides = array<i32>} : memref<1x3x1xf32, #tpu.memory_space<vmem>>, vector<1x3x1xf32>,
    %c0_13 = arith.constant 0 : index
    %c0_14 = arith.constant 0 : index
    %c0_15 = arith.constant 0 : index
    %13 = vector.load %arg6[%c0_13, %c0_14, %c0_15] : memref<1x3x1xf32, #tpu.memory_space<vmem>>, vector<1x3x1xf32>
    %14 = arith.mulf %2, %2 : vector<3x128xf32>
    %cst_16 = arith.constant dense<0.000000e+00> : vector<3xf32>
    %15 = vector.multi_reduction <add>, %14, %cst_16 [1] : vector<3x128xf32> to vector<3xf32>
    %16 = vector.shape_cast %15 : vector<3xf32> to vector<3x1xf32>
    %17 = vector.shape_cast %16 : vector<3x1xf32> to vector<1x3x1xf32>
    %18 = arith.addf %13, %17 : vector<1x3x1xf32>
    %c0_17 = arith.constant 0 : index
    %c0_18 = arith.constant 0 : index
    %c0_19 = arith.constant 0 : index
    %19 = vector.load %arg6[%c0_17, %c0_18, %c0_19] : memref<1x3x1xf32, #tpu.memory_space<vmem>>, vector<1x3x1xf32>
    tpu.vector_store %arg6[%c0_17, %c0_18, %c0_19], %18 {strides = array<i32>} : memref<1x3x1xf32, #tpu.memory_space<vmem>>, vector<1x3x1xf32>,
    return
  }
  func.func @transform_0(%arg0: i32, %arg1: i32) -> (i32, i32) {
    %c2_i32 = arith.constant 2 : i32
    %0 = arith.muli %arg0, %c2_i32 : i32
    %1 = arith.addi %0, %arg1 : i32
    %c0_i32 = arith.constant 0 : i32
    %c0_i32_0 = arith.constant 0 : i32
    return %c0_i32, %1 : i32, i32
  }
  func.func @transform_1(%arg0: i32, %arg1: i32) -> (i32, i32) {
    %c0_i32 = arith.constant 0 : i32
    %c0_i32_0 = arith.constant 0 : i32
    %c0_i32_1 = arith.constant 0 : i32
    return %c0_i32, %c0_i32_0 : i32, i32
  }
  func.func @transform_2(%arg0: i32, %arg1: i32) -> (i32, i32) {
    %c2_i32 = arith.constant 2 : i32
    %0 = arith.muli %arg0, %c2_i32 : i32
    %1 = arith.addi %0, %arg1 : i32
    %c0_i32 = arith.constant 0 : i32
    %c0_i32_0 = arith.constant 0 : i32
    return %c0_i32, %1 : i32, i32
  }
  func.func @transform_3(%arg0: i32, %arg1: i32) -> (i32, i32, i32) {
    %c0_i32 = arith.constant 0 : i32
    %c0_i32_0 = arith.constant 0 : i32
    %c0_i32_1 = arith.constant 0 : i32
    return %arg0, %c0_i32, %c0_i32_0 : i32, i32, i32
  }
  func.func @transform_4(%arg0: i32, %arg1: i32) -> (i32, i32, i32) {
    %c0_i32 = arith.constant 0 : i32
    %c0_i32_0 = arith.constant 0 : i32
    %c0_i32_1 = arith.constant 0 : i32
    return %arg0, %c0_i32, %c0_i32_0 : i32, i32, i32
  }
}

</mosaic_0001>

<llo_original>
// kernel: cobare_forward.1
$region0: #{cobare_forward.1}
  #allocation0 [shape = 'u32[]', space=smem, size = 0x4, offset = 0x4, fixed_abs, tag = 'smem constant byte address 0x4 - core index']
  #allocation1 [shape = 'u32[144,128]{1,0:T(1,128)}', space=vmem, size = 0x12000, scoped, tag = 'internal scratch']
  %s0 = inlined_call_operand.vmem [shape: bf16[27,512], index: 0, kind: input, shape index: {}]
  %s1 = inlined_call_operand.vmem [shape: bf16[3,27], index: 1, kind: input, shape index: {}]
  %s2 = inlined_call_operand.vmem [shape: f32[3,512], index: 2, kind: output, shape index: {0}]
  %s3 = inlined_call_operand.vmem [shape: f32[2,3,1], index: 3, kind: output, shape index: {1}]
  %s4 = inlined_call_operand.vmem [shape: f32[2,3,1], index: 4, kind: output, shape index: {2}]
  %5 = xla_tuple %s2, %s3, %s4
  %s6 = sld [smem:[#allocation0]]
  $region102: #{cobare_forward.1} parent=0
    _
  %s8 = ssub.s32 1, %s6
  %s9 = scalar_select 0, %s8, %s6
  $region1: #{cobare_forward.1} parent=0
    #allocation2 [shape = 'u8[16384]{0}', space=vmem, size = 0x4000, scoped, tag = 'input window, operand 0']
    loop: start=0, step=1, limit=6
    $region2: #{cobare_forward.1} parent=1 // loop_pre_header
      _
    $region3: #{cobare_forward.1} parent=1 // loop_header
      %s11 = sphi 0, %s15
      %p12 = scmp.ge.s32.totalorder %s11, 6
      %s18 = sphi 0, %s30
      %s19 = sphi 0, %s26
      %s20 = sphi 0, %s18
      %s21 = sphi 0, %s19
      %s22 = sphi 0, %s20
      %s23 = sphi 0, %s21
      %s37 = sphi 0, %s39
      %s40 = sphi 0, %s37
      %s41 = sphi 0, %s40
      %s57 = sphi 0, %s41
      %s61 = sphi 0, %s61
      %s63 = sphi 0, %s61
      %s64 = sphi 0, %s63
      %s78 = sphi 0, %s64
      %s88 = sphi 0, %s90
      %s91 = sphi 0, %s88
      %s92 = sphi 0, %s91
      %s108 = sphi 0, %s92
      %s114 = sphi 0, %s116
      %s117 = sphi 0, %s114
      %s118 = sphi 0, %s117
      %s134 = sphi 0, %s118
      %s140 = sphi 0, %s142
      %s143 = sphi 0, %s140
      %s144 = sphi 0, %s143
      %s160 = sphi 0, %s144
    $region4: #{cobare_forward.1} parent=1 // loop_header_branch
      %14 = sbr.rel (%p12) target = $region8
    $region5: #{cobare_forward.1} parent=1 // loop_body
      %s16 = ssub.s32 %s11, 1
      %s17 = ssub.s32 %s11, 2
      %s24 = sadd.s32 1, %s19
      %p25 = scmp.ge.s32.totalorder %s24, 2
      %s26 = scalar_select %p25, 0, %s24
      %s27 = sadd.s32 1, %s18
      %s28 = scalar_select %p25, %s27, %s18
      %p29 = scmp.ge.s32.totalorder %s28, 2
      %s30 = scalar_select %p29, 0, %s28
      %s31 = smul.u32 %s18, 2
      %s32 = sadd.s32 %s31, %s19
      %s33 = smul.u32 %s30, 2
      %s34 = sadd.s32 %s33, %s26
      %s35 = ssub.s32 %s32, %s34
      %p36 = scmp.eq.s32.totalorder %s35, 0
      %s38 = sadd.s32 %s37, 1
      %s39 = scalar_select %p36, %s37, %s38
      %p42 = pneg %p36
      %p43 = scmp.eq.s32.totalorder %s11, 3
      %p44 = por %p42, %p43
      %p45 = scmp.ne.s32.totalorder %s37, %s40
      %p46 = scmp.eq.s32.totalorder %s11, 0
      %p47 = por %p45, %p46
      %p48 = scmp.ne.s32.totalorder %s37, %s40
      %p49 = scmp.eq.s32.totalorder %s16, 3
      %p50 = por %p48, %p49
      %p51 = scmp.ne.s32.totalorder %s40, %s41
      %p52 = scmp.eq.s32.totalorder %s16, 0
      %p53 = por %p51, %p52
      %p54 = scmp.ne.s32.totalorder %s40, %s41
      %p55 = scmp.eq.s32.totalorder %s17, 3
      %p56 = por %p54, %p55
      %p58 = scmp.ne.s32.totalorder %s41, %s57
      %p59 = scmp.eq.s32.totalorder %s17, 0
      %p60 = por %p58, %p59
      %s62 = sadd.s32 %s61, 1
      %p65 = scmp.eq.s32.totalorder %s11, 3
      %p66 = scmp.ne.s32.totalorder %s61, %s63
      %p67 = scmp.eq.s32.totalorder %s11, 0
      %p68 = por %p66, %p67
      %p69 = scmp.ne.s32.totalorder %s61, %s63
      %p70 = scmp.eq.s32.totalorder %s16, 3
      %p71 = por %p69, %p70
      %p72 = scmp.ne.s32.totalorder %s63, %s64
      %p73 = scmp.eq.s32.totalorder %s16, 0
      %p74 = por %p72, %p73
      %p75 = scmp.ne.s32.totalorder %s63, %s64
      %p76 = scmp.eq.s32.totalorder %s17, 3
      %p77 = por %p75, %p76
      %p79 = scmp.ne.s32.totalorder %s64, %s78
      %p80 = scmp.eq.s32.totalorder %s17, 0
      %p81 = por %p79, %p80
      %s82 = smul.u32 %s18, 2
      %s83 = sadd.s32 %s82, %s19
      %s84 = smul.u32 %s30, 2
      %s85 = sadd.s32 %s84, %s26
      %s86 = ssub.s32 %s83, %s85
      %p87 = scmp.eq.s32.totalorder %s86, 0
      %s89 = sadd.s32 %s88, 1
      %s90 = scalar_select %p87, %s88, %s89
      %p93 = pneg %p87
      %p94 = scmp.eq.s32.totalorder %s11, 3
      %p95 = por %p93, %p94
      %p96 = scmp.ne.s32.totalorder %s88, %s91
      %p97 = scmp.eq.s32.totalorder %s11, 0
      %p98 = por %p96, %p97
      %p99 = scmp.ne.s32.totalorder %s88, %s91
      %p100 = scmp.eq.s32.totalorder %s16, 3
      %p101 = por %p99, %p100
      %p102 = scmp.ne.s32.totalorder %s91, %s92
      %p103 = scmp.eq.s32.totalorder %s16, 0
      %p104 = por %p102, %p103
      %p105 = scmp.ne.s32.totalorder %s91, %s92
      %p106 = scmp.eq.s32.totalorder %s17, 3
      %p107 = por %p105, %p106
      %p109 = scmp.ne.s32.totalorder %s92, %s108
      %p110 = scmp.eq.s32.totalorder %s17, 0
      %p111 = por %p109, %p110
      %s112 = ssub.s32 %s18, %s30
      %p113 = scmp.eq.s32.totalorder %s112, 0
      %s115 = sadd.s32 %s114, 1
      %s116 = scalar_select %p113, %s114, %s115
      %p119 = pneg %p113
      %p120 = scmp.eq.s32.totalorder %s11, 3
      %p121 = por %p119, %p120
      %p122 = scmp.ne.s32.totalorder %s114, %s117
      %p123 = scmp.eq.s32.totalorder %s11, 0
      %p124 = por %p122, %p123
      %p125 = scmp.ne.s32.totalorder %s114, %s117
      %p126 = scmp.eq.s32.totalorder %s16, 3
      %p127 = por %p125, %p126
      %p128 = scmp.ne.s32.totalorder %s117, %s118
      %p129 = scmp.eq.s32.totalorder %s16, 0
      %p130 = por %p128, %p129
      %p131 = scmp.ne.s32.totalorder %s117, %s118
      %p132 = scmp.eq.s32.totalorder %s17, 3
      %p133 = por %p131, %p132
      %p135 = scmp.ne.s32.totalorder %s118, %s134
      %p136 = scmp.eq.s32.totalorder %s17, 0
      %p137 = por %p135, %p136
      %s138 = ssub.s32 %s18, %s30
      %p139 = scmp.eq.s32.totalorder %s138, 0
      %s141 = sadd.s32 %s140, 1
      %s142 = scalar_select %p139, %s140, %s141
      %p145 = pneg %p139
      %p146 = scmp.eq.s32.totalorder %s11, 3
      %p147 = por %p145, %p146
      %p148 = scmp.ne.s32.totalorder %s140, %s143
      %p149 = scmp.eq.s32.totalorder %s11, 0
      %p150 = por %p148, %p149
      %p151 = scmp.ne.s32.totalorder %s140, %s143
      %p152 = scmp.eq.s32.totalorder %s16, 3
      %p153 = por %p151, %p152
      %p154 = scmp.ne.s32.totalorder %s143, %s144
      %p155 = scmp.eq.s32.totalorder %s16, 0
      %p156 = por %p154, %p155
      %p157 = scmp.ne.s32.totalorder %s143, %s144
      %p158 = scmp.eq.s32.totalorder %s17, 3
      %p159 = por %p157, %p158
      %p161 = scmp.ne.s32.totalorder %s144, %s160
      %p162 = scmp.eq.s32.totalorder %s17, 0
      %p163 = por %p161, %p162
      %p164 = scmp.le.s32.totalorder 1, %s11
      %p165 = scmp.lt.s32.totalorder %s11, 5
      %p166 = pnand %p164, %p165
      %p167 = pneg %p166
      // Predicated region
      $region9: #{cobare_forward.1} parent=5 // pred_check
        _
      $region10: #{cobare_forward.1} parent=5 // pred_check_branch
        %169 = sbr.rel (%p166) target = $region12
      $region11: #{cobare_forward.1} parent=5 // pred_region
        %s170 = ssub.s32 %s11, 1
        // Predicated region
        $region13: #{cobare_forward.1} parent=11 // pred_check
          %p171 = pneg %p74
        $region14: #{cobare_forward.1} parent=11 // pred_check_branch
          %173 = sbr.rel (%p171) target = $region16
        $region15: #{cobare_forward.1} parent=11 // pred_region
          _
        $region16: #{cobare_forward.1} parent=11 // pred_fallthru
          _
      $region12: #{cobare_forward.1} parent=5 // pred_fallthru
        _
      %p174 = scmp.lt.s32.totalorder %s11, 4
      // Predicated region
      $region17: #{cobare_forward.1} parent=5 // pred_check
        %p175 = pneg %p174
      $region18: #{cobare_forward.1} parent=5 // pred_check_branch
        %177 = sbr.rel (%p175) target = $region20
      $region19: #{cobare_forward.1} parent=5 // pred_region
        // Predicated region
        $region21: #{cobare_forward.1} parent=19 // pred_check
          %p178 = pneg %p47
        $region22: #{cobare_forward.1} parent=19 // pred_check_branch
          %180 = sbr.rel (%p178) target = $region24
        $region23: #{cobare_forward.1} parent=19 // pred_region
          %s181 = sand.u32 %s37, 1
          %s182 = sand.u32 %s37, 1
          %s183 = smul.addr %s182, 16
          %s184 = scalar_lea.vmem [#allocation2], %s183
          %s185 = smul.u32 %s18, 2
          %s186 = sadd.s32 %s185, %s19
          %s187 = smul.addr %s186, 4
          %s188 = scalar_lea.vmem %s0, %s187
          // Predicated region
          $region25: #{cobare_forward.1} parent=23 // pred_check
            _
          $region26: #{cobare_forward.1} parent=23 // pred_check_branch
            %190 = sbr.rel (0) target = $region28
          $region27: #{cobare_forward.1} parent=23 // pred_region
            // Predicated region
            $region29: #{cobare_forward.1} parent=27 // pred_check
              _
            $region30: #{cobare_forward.1} parent=27 // pred_check_branch
              %192 = sbr.rel target = $region32
            $region31: #{cobare_forward.1} parent=27 // pred_region
              // Predicated region
              $region44: #{cobare_forward.1} parent=31 // pred_check
                _
              $region45: #{cobare_forward.1} parent=31 // pred_check_branch
                %214 = sbr.rel (0) target = $region47
              $region46: #{cobare_forward.1} parent=31 // pred_region
                loop: start=0, step=1, limit=1
                $region48: #{cobare_forward.1} parent=46 // loop_pre_header
                  _
                $region49: #{cobare_forward.1} parent=46 // loop_header
                  %s216 = sphi 0, %s220
                  %p217 = scmp.ge.s32.totalorder %s216, 1
                  %s221 = sphi %s188, %s188
                  %s222 = sphi %s184, %s184
                $region50: #{cobare_forward.1} parent=46 // loop_header_branch
                  %219 = sbr.rel (%p217) target = $region54
                $region51: #{cobare_forward.1} parent=46 // loop_body
                  _
                $region52: #{cobare_forward.1} parent=46 // loop_footer
                  %s220 = sadd.s32 1, %s216
                $region53: #{cobare_forward.1} parent=46 // loop_footer_branch
                  %215 = sbr.rel target = $region49
                $region54: #{cobare_forward.1} parent=46 // loop_exit
                  _
                %s224 = ssub.s32 16, 1
                loop: start=0, step=1, limit=1
                $region55: #{cobare_forward.1} parent=46 // loop_pre_header
                  _
                $region56: #{cobare_forward.1} parent=46 // loop_header
                  %s226 = sphi 0, %s230
                  %p227 = scmp.ge.s32.totalorder %s226, 1
                  %s231 = sphi %s188, %s188
                  %s232 = sphi %s184, %s184
                $region57: #{cobare_forward.1} parent=46 // loop_header_branch
                  %229 = sbr.rel (%p227) target = $region61
                $region58: #{cobare_forward.1} parent=46 // loop_body
                  %v233 = vld [vmem:[%s231] sm:%s224]
                  %234 = vst [vmem:[%s232] sm:%s224] %v233
                  %v235 = vld [vmem:[%s231 + $0x10] sm:%s224]
                  %236 = vst [vmem:[%s232 + $0x4] sm:%s224] %v235
                  %v237 = vld [vmem:[%s231 + $0x20] sm:%s224]
                  %238 = vst [vmem:[%s232 + $0x8] sm:%s224] %v237
                  %v239 = vld [vmem:[%s231 + $0x30] sm:%s224]
                  %240 = vst [vmem:[%s232 + $0xc] sm:%s224] %v239
                $region59: #{cobare_forward.1} parent=46 // loop_footer
                  %s230 = sadd.s32 1, %s226
                $region60: #{cobare_forward.1} parent=46 // loop_footer_branch
                  %225 = sbr.rel target = $region56
                $region61: #{cobare_forward.1} parent=46 // loop_exit
                  _
              $region47: #{cobare_forward.1} parent=31 // pred_fallthru
                _
            $region32: #{cobare_forward.1} parent=27 // pred_fallthru
              _
            // Predicated region
            $region33: #{cobare_forward.1} parent=27 // pred_check
              _
            $region34: #{cobare_forward.1} parent=27 // pred_check_branch
              %194 = sbr.rel (0) target = $region36
            $region35: #{cobare_forward.1} parent=27 // pred_region
              %s196 = ssub.s32 16, 1
              loop: start=0, step=1, limit=1
              $region37: #{cobare_forward.1} parent=35 // loop_pre_header
                _
              $region38: #{cobare_forward.1} parent=35 // loop_header
                %s198 = sphi 0, %s202
                %p199 = scmp.ge.s32.totalorder %s198, 1
                %s203 = sphi %s188, %s188
                %s204 = sphi %s184, %s184
              $region39: #{cobare_forward.1} parent=35 // loop_header_branch
                %201 = sbr.rel (%p199) target = $region43
              $region40: #{cobare_forward.1} parent=35 // loop_body
                %v205 = vld [vmem:[%s203] sm:%s196]
                %206 = vst [vmem:[%s204] sm:%s196] %v205
                %v207 = vld [vmem:[%s203 + $0x10] sm:%s196]
                %208 = vst [vmem:[%s204 + $0x4] sm:%s196] %v207
                %v209 = vld [vmem:[%s203 + $0x20] sm:%s196]
                %210 = vst [vmem:[%s204 + $0x8] sm:%s196] %v209
                %v211 = vld [vmem:[%s203 + $0x30] sm:%s196]
                %212 = vst [vmem:[%s204 + $0xc] sm:%s196] %v211
              $region41: #{cobare_forward.1} parent=35 // loop_footer
                %s202 = sadd.s32 1, %s198
              $region42: #{cobare_forward.1} parent=35 // loop_footer_branch
                %197 = sbr.rel target = $region38
              $region43: #{cobare_forward.1} parent=35 // loop_exit
                _
            $region36: #{cobare_forward.1} parent=27 // pred_fallthru
              _
          $region28: #{cobare_forward.1} parent=23 // pred_fallthru
            _
          %241 = vnop
        $region24: #{cobare_forward.1} parent=19 // pred_fallthru
          _
      $region20: #{cobare_forward.1} parent=5 // pred_fallthru
        _
      %p242 = scmp.le.s32.totalorder 1, %s11
      %p243 = scmp.lt.s32.totalorder %s11, 5
      %p244 = pnand %p242, %p243
      %p245 = pneg %p244
      // Predicated region
      $region62: #{cobare_forward.1} parent=5 // pred_check
        _
      $region63: #{cobare_forward.1} parent=5 // pred_check_branch
        %247 = sbr.rel (%p244) target = $region65
      $region64: #{cobare_forward.1} parent=5 // pred_region
        %s248 = ssub.s32 %s11, 1
        %s249 = sand.u32 %s40, 1
        %s250 = sand.u32 %s40, 1
        %s251 = smul.addr %s250, 16
        %s252 = scalar_lea.vmem [#allocation2], %s251
        // Predicated region
        $region66: #{cobare_forward.1} parent=64 // pred_check
          %p253 = pneg %p53
        $region67: #{cobare_forward.1} parent=64 // pred_check_branch
          %255 = sbr.rel (%p253) target = $region69
        $region68: #{cobare_forward.1} parent=64 // pred_region
          _
        $region69: #{cobare_forward.1} parent=64 // pred_fallthru
          _
        %s256 = sand.u32 %s40, 1
        %s257 = sand.u32 %s40, 1
        %s258 = smul.addr %s257, 16
        %s259 = scalar_lea.vmem [#allocation2], %s258
        %p260 = pneg %p53
        %p261 = pneg %p50
        %p262 = pneg %p74
        %p263 = pneg %p71
        %p264 = pneg %p104
        %p265 = pneg %p101
        %s266 = smul.u32 %s20, 2
        %s267 = sadd.s32 %s266, %s21
        %p268 = scmp.lt.s32.totalorder %s267, 3
        %s269 = scalar_select %p268, %s267, 3
        %s270 = smul.addr %s269, 4
        %s271 = scalar_lea.vmem %s2, %s270
        %p272 = pneg %p130
        %p273 = pneg %p127
        %p274 = scmp.lt.s32.totalorder %s20, 1
        %s275 = scalar_select %p274, %s20, 1
        %s276 = smul.addr %s275, 4
        %s277 = scalar_lea.vmem %s3, %s276
        %p278 = pneg %p156
        %p279 = pneg %p153
        %p280 = scmp.lt.s32.totalorder %s20, 1
        %s281 = scalar_select %p280, %s20, 1
        %s282 = smul.addr %s281, 4
        %s283 = scalar_lea.vmem %s4, %s282
        %s284 = smul.u32 %s20, 2
        %s285 = sadd.s32 %s284, %s21
        %s286 = smul.u32 %s20, 2
        %s287 = sadd.s32 %s286, %s21
        %p288 = scmp.lt.s32.totalorder %s287, 3
        %s289 = scalar_select %p288, %s287, 3
        %s290 = smul.addr %s289, 4
        %s291 = scalar_lea.vmem %s2, %s290
        %s292 = smul.u32 %s20, 2
        %s293 = sadd.s32 %s292, %s21
        %p294 = scmp.lt.s32.totalorder %s20, 1
        %s295 = scalar_select %p294, %s20, 1
        %s296 = smul.addr %s295, 4
        %s297 = scalar_lea.vmem %s3, %s296
        %p298 = scmp.lt.s32.totalorder %s20, 1
        %s299 = scalar_select %p298, %s20, 1
        %s300 = smul.addr %s299, 4
        %s301 = scalar_lea.vmem %s4, %s300
        %v303 = vld [vmem:[%s1] sm:$0x3]
        %v304 = vld [vmem:[%s252] sm:$0xf]
        %v305 = vld [vmem:[%s252 + $0x4] sm:$0xf]
        %v306 = vld [vmem:[%s252 + $0x8] sm:$0xf]
        %v307 = vld [vmem:[%s252 + $0xc] sm:$0x3]
        %v312 = vunpack.c.l.b16 %v304
        %v313 = vunpack.c.l.b16 %v305
        %v314 = vunpack.c.l.b16 %v306
        %v315 = vunpack.c.l.b16 %v307
        %v316 = vpack.c.b16 %v313, %v312
        %v317 = vpack.c.b16 %v315, %v314
        %vm319 = vcmask 220160
        %v321 = vsel %vm319, %v303, 0
        %vm323 = vcmask 1044480
        %vm324 = vcmask 1045504
        %v325 = vsel %vm323, 4294967295, 65535
        %v326 = vsel %vm324, %v325, 0
        %v328 = vand.u32 %v317, %v326
        %330 = vmatprep.subr.bf16.mxu0 0
        %331 = vmatpush1.bf16.msra.mxu0 0
        %332 = vmatprep.subr.bf16.mxu0 0
        %333 = vmatpush1.bf16.msra.mxu0 0
        %334 = vmatprep.subr.bf16.mxu0 0
        %335 = vmatpush1.bf16.msra.mxu0 0
        %336 = vmatprep.subr.bf16.mxu0 0
        %337 = vmatpush1.bf16.msra.mxu0 0
        %338 = vmatprep.subr.bf16.mxu0 0
        %339 = vmatpush1.bf16.msra.mxu0 0
        %340 = vmatprep.subr.bf16.mxu0 0
        %341 = vmatpush1.bf16.msra.mxu0 0
        %342 = vmatprep.subr.bf16.mxu0 0
        %343 = vmatpush1.bf16.msra.mxu0 %v328
        %344 = vmatprep.subr.bf16.mxu0 0
        %345 = vmatpush1.bf16.msra.mxu0 %v316
        %346 = vmatprep.subr.bf16.mxu0 0
        %347 = vmatpush2.bf16.msra.mxu0 0
        %348 = vmatprep.subr.bf16.mxu0 0
        %349 = vmatpush2.bf16.msra.mxu0 0
        %350 = vmatprep.subr.bf16.mxu0 0
        %351 = vmatpush2.bf16.msra.mxu0 0
        %352 = vmatprep.subr.bf16.mxu0 0
        %353 = vmatpush2.bf16.msra.mxu0 0
        %354 = vmatprep.subr.bf16.mxu0 0
        %355 = vmatpush2.bf16.msra.mxu0 0
        %356 = vmatprep.subr.bf16.mxu0 0
        %357 = vmatpush2.bf16.msra.mxu0 0
        %358 = vmatprep.subr.bf16.mxu0 0
        %359 = vmatpush2.bf16.msra.mxu0 0
        %360 = vmatprep.subr.bf16.mxu0 0
        %361 = vmatpush2.bf16.msra.mxu0 0
        %362 = vmatprep.mubr.bf16.mxu0 0
        %363 = vmatmul.mubr.bf16.gmra.mxu0 %v321
        %v364 = vpop.f32.mrf.mxu0
        %v365 = vadd.f32 0.0, %v364
        %v366 = vpop.f32.mrf.mxu0
        %v367 = vpop.f32.mrf.mxu0
        %v368 = vpop.f32.mrf.mxu0
        %369 = vdwg.mxu0
        %370 = vst [vmem:[%s291] sm:$0x7] %v365
        %p371 = scmp.eq.s32.totalorder %s21, 0
        // Predicated region
        $region70: #{cobare_forward.1} parent=64 // pred_check
          %p372 = pneg %p371
        $region71: #{cobare_forward.1} parent=64 // pred_check_branch
          %374 = sbr.rel (%p372) target = $region73
        $region72: #{cobare_forward.1} parent=64 // pred_region
          %vm375 = vcmask 2048
          %376 = vst.msk [vmem:[%s297] sm:$0x7] %vm375, 0.0
          %377 = vst.msk [vmem:[%s301] sm:$0x7] %vm375, 0.0
        $region73: #{cobare_forward.1} parent=64 // pred_fallthru
          _
        %v378 = vld [vmem:[%s297] sm:$0x7]
        %vm379 = vcmask 1042432
        %v380 = vsel %vm379, %v365, 0.0
        %381 = vadd.xlane.f32.xlu0 %v380
        %v382 = vpop.xlane.xlu0 %381
        %v383 = vadd.f32 %v378, %v382
        %vm384 = vcmask 2048
        %385 = vst.msk [vmem:[%s297] sm:$0x7] %vm384, %v383
        %v386 = vld [vmem:[%s301] sm:$0x7]
        %v387 = vmul.f32 %v365, %v365
        %v388 = vsel %vm379, %v387, 0.0
        %389 = vadd.xlane.f32.xlu0 %v388
        %v390 = vpop.xlane.xlu0 %389
        %v391 = vadd.f32 %v386, %v390
        %392 = vst.msk [vmem:[%s301] sm:$0x7] %vm384, %v391
        %s393 = smul.u32 %s20, 2
        %s394 = sadd.s32 %s393, %s21
        %p395 = scmp.lt.s32.totalorder %s394, 3
        %s396 = scalar_select %p395, %s394, 3
        %s397 = smul.addr %s396, 4
        %s398 = scalar_lea.vmem %s2, %s397
        %p399 = scmp.lt.s32.totalorder %s20, 1
        %s400 = scalar_select %p399, %s20, 1
        %s401 = smul.addr %s400, 4
        %s402 = scalar_lea.vmem %s3, %s401
        %p403 = scmp.lt.s32.totalorder %s20, 1
        %s404 = scalar_select %p403, %s20, 1
        %s405 = smul.addr %s404, 4
        %s406 = scalar_lea.vmem %s4, %s405
        // Predicated region
        $region74: #{cobare_forward.1} parent=64 // pred_check
          %p407 = pneg %p101
        $region75: #{cobare_forward.1} parent=64 // pred_check_branch
          %409 = sbr.rel (%p407) target = $region77
        $region76: #{cobare_forward.1} parent=64 // pred_region
          %s410 = smul.u32 %s20, 2
          %s411 = sadd.s32 %s410, %s21
        $region77: #{cobare_forward.1} parent=64 // pred_fallthru
          _
        // Predicated region
        $region78: #{cobare_forward.1} parent=64 // pred_check
          %p412 = pneg %p127
        $region79: #{cobare_forward.1} parent=64 // pred_check_branch
          %414 = sbr.rel (%p412) target = $region81
        $region80: #{cobare_forward.1} parent=64 // pred_region
          _
        $region81: #{cobare_forward.1} parent=64 // pred_fallthru
          _
        // Predicated region
        $region82: #{cobare_forward.1} parent=64 // pred_check
          %p415 = pneg %p153
        $region83: #{cobare_forward.1} parent=64 // pred_check_branch
          %417 = sbr.rel (%p415) target = $region85
        $region84: #{cobare_forward.1} parent=64 // pred_region
          _
        $region85: #{cobare_forward.1} parent=64 // pred_fallthru
          _
      $region65: #{cobare_forward.1} parent=5 // pred_fallthru
        _
      %p418 = scmp.le.s32.totalorder 2, %s11
      // Predicated region
      $region86: #{cobare_forward.1} parent=5 // pred_check
        %p419 = pneg %p418
      $region87: #{cobare_forward.1} parent=5 // pred_check_branch
        %421 = sbr.rel (%p419) target = $region89
      $region88: #{cobare_forward.1} parent=5 // pred_region
        %s422 = ssub.s32 %s11, 2
        // Predicated region
        $region90: #{cobare_forward.1} parent=88 // pred_check
          %p423 = pneg %p107
        $region91: #{cobare_forward.1} parent=88 // pred_check_branch
          %425 = sbr.rel (%p423) target = $region93
        $region92: #{cobare_forward.1} parent=88 // pred_region
          %s426 = smul.u32 %s22, 2
          %s427 = sadd.s32 %s426, %s23
          %p428 = scmp.lt.s32.totalorder %s427, 3
          %s429 = scalar_select %p428, %s427, 3
          %s430 = smul.addr %s429, 4
          %s431 = scalar_lea.vmem %s2, %s430
        $region93: #{cobare_forward.1} parent=88 // pred_fallthru
          _
        // Predicated region
        $region94: #{cobare_forward.1} parent=88 // pred_check
          %p432 = pneg %p133
        $region95: #{cobare_forward.1} parent=88 // pred_check_branch
          %434 = sbr.rel (%p432) target = $region97
        $region96: #{cobare_forward.1} parent=88 // pred_region
          %p435 = scmp.lt.s32.totalorder %s22, 1
          %s436 = scalar_select %p435, %s22, 1
          %s437 = smul.addr %s436, 4
          %s438 = scalar_lea.vmem %s3, %s437
        $region97: #{cobare_forward.1} parent=88 // pred_fallthru
          _
        // Predicated region
        $region98: #{cobare_forward.1} parent=88 // pred_check
          %p439 = pneg %p159
        $region99: #{cobare_forward.1} parent=88 // pred_check_branch
          %441 = sbr.rel (%p439) target = $region101
        $region100: #{cobare_forward.1} parent=88 // pred_region
          %p442 = scmp.lt.s32.totalorder %s22, 1
          %s443 = scalar_select %p442, %s22, 1
          %s444 = smul.addr %s443, 4
          %s445 = scalar_lea.vmem %s4, %s444
        $region101: #{cobare_forward.1} parent=88 // pred_fallthru
          _
      $region89: #{cobare_forward.1} parent=5 // pred_fallthru
        _
    $region6: #{cobare_forward.1} parent=1 // loop_footer
      %s15 = sadd.s32 1, %s11
    $region7: #{cobare_forward.1} parent=1 // loop_footer_branch
      %10 = sbr.rel target = $region3
    $region8: #{cobare_forward.1} parent=1 // loop_exit
      _

</llo_original>
